<compile_context>
chip_gen: v6e
topology: v6e:2x2x1
jax: 0.10.0
libtpu: 0.0.40
codegen_flags: <defaults>
</compile_context>

<pallas_src>
import jax
import jax.numpy as jnp
from jax import lax
from jax.experimental import pallas as pl
from jax.experimental.pallas import tpu as pltpu

NUM_CLASSES = 10       # config.num_classes
IN_FEATURES = 128
_SINGLE_TILE_MAX = 128  # at or below this batch, one block covers the whole problem


def _round_up(x, m):
    return ((x + m - 1) // m) * m


def evidential_head_kernel(x_ref, w_ref, b_ref, o_ref):
    # MXU: (C, TB) = W @ x^T  (einsum 'cd,bd->cb'), f32 accumulate.
    logits_t = lax.dot_general(
        w_ref[...], x_ref[...],
        dimension_numbers=(((1,), (1,)), ((), ())),
        preferred_element_type=jnp.float32)
    # Bias broadcast along lanes (VPU), exp (EUP), eps -- all on a lane-dense tile.
    o_ref[...] = (jnp.exp(logits_t + b_ref[...]) + 1e-6).astype(o_ref.dtype)


def _pick_tile(batch, block_b):
    """Choose (batch_tile, num_tiles)."""
    if batch <= _SINGLE_TILE_MAX:
        # Single block == full array dims (satisfies block-shape rules for any B).
        return batch, 1
    # Tiled path: tile is a multiple of 128 (lane-dense transposed output block)
    # and capped at ceil(B/2) so there are >= 2 grid steps (v7x megacore split).
    tb = min(_round_up(block_b, 128), _round_up(pl.cdiv(batch, 2), 128))
    return tb, pl.cdiv(batch, tb)


def evidential_head(x, weight, bias, *, block_b=8192):
    """x: (B, 128) f32, weight: (10, 128) f32 (PyTorch layout), bias: (10,) f32.

    Returns evidence of shape (B, 10), matching EvidentialHead.forward.
    """
    B = x.shape[0]
    assert x.shape[1] == IN_FEATURES
    assert weight.shape == (NUM_CLASSES, IN_FEATURES)
    assert bias.shape == (NUM_CLASSES,)

    TB, num_tiles = _pick_tile(B, block_b)
    bias2d = bias.reshape(NUM_CLASSES, 1)

    cost = pl.CostEstimate(
        flops=2 * B * IN_FEATURES * NUM_CLASSES,
        transcendentals=B * NUM_CLASSES,
        bytes_accessed=4 * (B * IN_FEATURES                # read x
                            + NUM_CLASSES * IN_FEATURES    # read W
                            + NUM_CLASSES                  # read bias
                            + B * NUM_CLASSES),            # write evidence
    )

    out_t = pl.pallas_call(
        evidential_head_kernel,
        out_shape=jax.ShapeDtypeStruct((NUM_CLASSES, B), jnp.float32),
        grid_spec=pl.GridSpec(
            grid=(num_tiles,),
            in_specs=[
                # x: one batch tile per grid step (double-buffered; ragged edge padded).
                pl.BlockSpec((TB, IN_FEATURES), lambda i: (i, 0)),
                # weight / bias: constant block index -> resident in VMEM across steps.
                pl.BlockSpec((NUM_CLASSES, IN_FEATURES), lambda i: (0, 0)),
                pl.BlockSpec((NUM_CLASSES, 1), lambda i: (0, 0)),
            ],
            # Lane-dense transposed output tile; ragged edge writeback is masked.
            out_specs=pl.BlockSpec((NUM_CLASSES, TB), lambda i: (0, i)),
        ),
        compiler_params=pltpu.CompilerParams(
            dimension_semantics=("parallel",),
        ),
        cost_estimate=cost,
    )(x, weight, bias2d)

    # Tiny (10, B) -> (B, 10) transpose in the wrapper (40 B/row vs 512 B/row x read).
    return out_t.T


if __name__ == "__main__":
    key = jax.random.PRNGKey(0)
    kx, kw, kb = jax.random.split(key, 3)

    # Deterministic params mimicking nn.Linear's uniform(-1/sqrt(128), 1/sqrt(128)).
    bound = 1.0 / (IN_FEATURES ** 0.5)
    weight = jax.random.uniform(kw, (NUM_CLASSES, IN_FEATURES),
                                dtype=jnp.float32, minval=-bound, maxval=bound)
    bias = jax.random.uniform(kb, (NUM_CLASSES,),
                              dtype=jnp.float32, minval=-bound, maxval=bound)

    def ref_fn(xv):
        return jnp.exp(xv @ weight.T + bias) + 1e-6

    # Small batch: single-block path.
    B = 8
    x = jax.random.normal(kx, (B, IN_FEATURES), dtype=jnp.float32) * 0.1
    out = jax.block_until_ready(evidential_head(x, weight, bias))
    assert out.shape == (B, NUM_CLASSES)
    assert jnp.allclose(out, ref_fn(x), rtol=1e-5, atol=1e-6), "mismatch (B=8)"

    # Ragged multi-tile path: B=300, tile 128 -> grid=3 with a masked edge block.
    B2 = 300
    x2 = jax.random.normal(kx, (B2, IN_FEATURES), dtype=jnp.float32) * 0.1
    out2 = jax.block_until_ready(evidential_head(x2, weight, bias, block_b=128))
    assert out2.shape == (B2, NUM_CLASSES)
    assert jnp.allclose(out2, ref_fn(x2), rtol=1e-5, atol=1e-6), "mismatch (B=300)"

    # Default-tile path with >=2 grid steps (tile = ceil(B/2) rounded to 128).
    B3 = 1000
    x3 = jax.random.normal(kx, (B3, IN_FEATURES), dtype=jnp.float32) * 0.1
    out3 = jax.block_until_ready(evidential_head(x3, weight, bias))
    assert out3.shape == (B3, NUM_CLASSES)
    assert jnp.allclose(out3, ref_fn(x3), rtol=1e-5, atol=1e-6), "mismatch (B=1000)"

    print("KERNEL_OK")
</pallas_src>

<mosaic_0001>
module attributes {stable_mosaic.version = 11 : i64} {
  func.func @evidential_head_kernel(%arg0: i32, %arg1: memref<8x128xf32, #tpu.memory_space<vmem>>, %arg2: memref<10x128xf32, #tpu.memory_space<vmem>>, %arg3: memref<10x1xf32, #tpu.memory_space<vmem>>, %arg4: memref<10x8xf32, #tpu.memory_space<vmem>>) attributes {dimension_semantics = [#tpu.dimension_semantics<parallel>], iteration_bounds = array<i64: 1>, scalar_prefetch = 0 : i64, scratch_operands = 0 : i64, tpu.core_type = #tpu.core_type<tc>, window_params = [{transform_indices = @transform_0, window_bounds = array<i64: 8, 128>}, {pipeline_mode = #tpu.pipeline_mode<synchronous>, transform_indices = @transform_1, window_bounds = array<i64: 10, 128>}, {pipeline_mode = #tpu.pipeline_mode<synchronous>, transform_indices = @transform_2, window_bounds = array<i64: 10, 1>}, {transform_indices = @transform_3, window_bounds = array<i64: 10, 8>}]} {
    %c0 = arith.constant 0 : index
    %c0_0 = arith.constant 0 : index
    %0 = vector.load %arg2[%c0, %c0_0] : memref<10x128xf32, #tpu.memory_space<vmem>>, vector<10x128xf32>
    %c0_1 = arith.constant 0 : index
    %c0_2 = arith.constant 0 : index
    %1 = vector.load %arg1[%c0_1, %c0_2] : memref<8x128xf32, #tpu.memory_space<vmem>>, vector<8x128xf32>
    %cst = arith.constant dense<0.000000e+00> : vector<10x8xf32>
    %2 = tpu.matmul %0, %1, %cst {dimension_numbers = #tpu.dot_dimension_numbers<[1], [1], [0], [0], [0, 0, 1, 0], [], []>} : vector<10x128xf32>, vector<8x128xf32>, vector<10x8xf32> -> vector<10x8xf32>
    %c0_3 = arith.constant 0 : index
    %c0_4 = arith.constant 0 : index
    %3 = vector.load %arg3[%c0_3, %c0_4] : memref<10x1xf32, #tpu.memory_space<vmem>>, vector<10x1xf32>
    %4 = vector.broadcast %3 : vector<10x1xf32> to vector<10x8xf32>
    %5 = arith.addf %2, %4 : vector<10x8xf32>
    %6 = math.exp %5 : vector<10x8xf32>
    %cst_5 = arith.constant 9.99999997E-7 : f32
    %7 = vector.broadcast %cst_5 : f32 to vector<10x8xf32>
    %8 = arith.addf %6, %7 : vector<10x8xf32>
    %c0_6 = arith.constant 0 : index
    %c0_7 = arith.constant 0 : index
    %9 = vector.load %arg4[%c0_6, %c0_7] : memref<10x8xf32, #tpu.memory_space<vmem>>, vector<10x8xf32>
    tpu.vector_store %arg4[%c0_6, %c0_7], %8 {strides = array<i32>} : memref<10x8xf32, #tpu.memory_space<vmem>>, vector<10x8xf32>,
    return
  }
  func.func @transform_0(%arg0: i32) -> (i32, i32) {
    %c0_i32 = arith.constant 0 : i32
    %c0_i32_0 = arith.constant 0 : i32
    return %arg0, %c0_i32 : i32, i32
  }
  func.func @transform_1(%arg0: i32) -> (i32, i32) {
    %c0_i32 = arith.constant 0 : i32
    %c0_i32_0 = arith.constant 0 : i32
    %c0_i32_1 = arith.constant 0 : i32
    return %c0_i32, %c0_i32_0 : i32, i32
  }
  func.func @transform_2(%arg0: i32) -> (i32, i32) {
    %c0_i32 = arith.constant 0 : i32
    %c0_i32_0 = arith.constant 0 : i32
    %c0_i32_1 = arith.constant 0 : i32
    return %c0_i32, %c0_i32_0 : i32, i32
  }
  func.func @transform_3(%arg0: i32) -> (i32, i32) {
    %c0_i32 = arith.constant 0 : i32
    %c0_i32_0 = arith.constant 0 : i32
    return %c0_i32, %arg0 : i32, i32
  }
}

</mosaic_0001>

<llo_original>
// kernel: tpu_custom_call.1
$region0: #{tpu_custom_call.1}
  #allocation0 [shape = 'u32[]', space=smem, size = 0x4, offset = 0x4, fixed_abs, tag = 'smem constant byte address 0x4 - core index']
  #allocation1 [shape = 'u32[144,128]{1,0:T(1,128)}', space=vmem, size = 0x12000, scoped, tag = 'internal scratch']
  %s0 = inlined_call_operand.hbm [shape: f32[8,128], index: 0, kind: input, shape index: {}]
  %s1 = inlined_call_operand.vmem [shape: f32[10,128], index: 1, kind: input, shape index: {}]
  %s2 = inlined_call_operand.vmem [shape: f32[10,1], index: 2, kind: input, shape index: {}]
  %s3 = inlined_call_operand.vmem [shape: f32[10,8], index: 3, kind: output, shape index: {}]
  %s4 = sld [smem:[#allocation0]]
  $region26: #{tpu_custom_call.1} parent=0
    _
  %s6 = ssub.s32 1, %s4
  %s7 = scalar_select 0, %s6, %s4
  $region1: #{tpu_custom_call.1} parent=0
    #allocation2 [shape = 'u8[4096]{0}', space=vmem, size = 0x1000, scoped, tag = 'input window, operand 0, single buffered']
    #allocation3 [shape = 's32[1]{0}', space=sflag, size = 0x4, scoped, tag = 'scoped memory for tpu_custom_call.1']
    %8 = vsyncpa [#allocation3], 0
    // Predicated region
    $region2: #{tpu_custom_call.1} parent=1 // pred_check
      _
    $region3: #{tpu_custom_call.1} parent=1 // pred_check_branch
      %10 = sbr.rel (0) target = $region5
    $region4: #{tpu_custom_call.1} parent=1 // pred_region
      %s12 = ssub.s32 128, 128
      %13 = vsyncadd [#allocation3], %s12
      %s15 = sshll.u32 [#allocation2], 4
      %s16 = int_to_ptr.vmem [resolvable:$true] %s15
      %18 = dma.hbm_to_vmem [thread:$0]  %s0, 128, %s16, [#allocation3]
    $region5: #{tpu_custom_call.1} parent=1 // pred_fallthru
      _
    // Predicated region
    $region6: #{tpu_custom_call.1} parent=1 // pred_check
      _
    $region7: #{tpu_custom_call.1} parent=1 // pred_check_branch
      %20 = sbr.rel (0) target = $region9
    $region8: #{tpu_custom_call.1} parent=1 // pred_region
      _
    $region9: #{tpu_custom_call.1} parent=1 // pred_fallthru
      _
    // Predicated region
    $region10: #{tpu_custom_call.1} parent=1 // pred_check
      _
    $region11: #{tpu_custom_call.1} parent=1 // pred_check_branch
      %22 = sbr.rel (0) target = $region13
    $region12: #{tpu_custom_call.1} parent=1 // pred_region
      _
    $region13: #{tpu_custom_call.1} parent=1 // pred_fallthru
      _
    // Predicated region
    $region14: #{tpu_custom_call.1} parent=1 // pred_check
      _
    $region15: #{tpu_custom_call.1} parent=1 // pred_check_branch
      %24 = sbr.rel (0) target = $region17
    $region16: #{tpu_custom_call.1} parent=1 // pred_region
      %25 = dma.done [#allocation3], 128
    $region17: #{tpu_custom_call.1} parent=1 // pred_fallthru
      _
    %v26 = vld [vmem:[%s1] sm:$0xff]
    %v27 = vld [vmem:[%s1 + $0x8] sm:$0x3]
    %v28 = vld [vmem:[#allocation2] sm:$0xff]
    %v29 = vld [vmem:[%s2] sm:$0xff]
    %v30 = vld [vmem:[%s2 + $0x8] sm:$0x3]
    %32 = vset.pattern.permute.xlu0 0
    %33 = vperm.xlu0 %32, %v29
    %v34 = vpop.permute.xlu0 %33
    %37 = vset.pattern.permute.xlu0 0
    %38 = vperm.xlu0 %37, %v30
    %v39 = vpop.permute.xlu0 %38
    %41 = vmatprep.subr.mxu0 0.0
    %42 = vmatpush1.xpose.msra.mxu0 0.0
    %43 = vmatprep.subr.mxu0 0.0
    %44 = vmatpush1.xpose.msra.mxu0 0.0
    %45 = vmatprep.subr.mxu0 0.0
    %46 = vmatpush1.xpose.msra.mxu0 0.0
    %47 = vmatprep.subr.mxu0 0.0
    %48 = vmatpush1.xpose.msra.mxu0 0.0
    %49 = vmatprep.subr.mxu0 0.0
    %50 = vmatpush1.xpose.msra.mxu0 0.0
    %51 = vmatprep.subr.mxu0 0.0
    %52 = vmatpush1.xpose.msra.mxu0 0.0
    %53 = vmatprep.subr.mxu0 0.0
    %54 = vmatpush1.xpose.msra.mxu0 0.0
    %55 = vmatprep.subr.mxu0 0.0
    %56 = vmatpush1.xpose.msra.mxu0 0.0
    %57 = vmatprep.subr.mxu0 0.0
    %58 = vmatpush1.xpose.msra.mxu0 0.0
    %59 = vmatprep.subr.mxu0 0.0
    %60 = vmatpush1.xpose.msra.mxu0 0.0
    %61 = vmatprep.subr.mxu0 0.0
    %62 = vmatpush1.xpose.msra.mxu0 0.0
    %63 = vmatprep.subr.mxu0 0.0
    %64 = vmatpush1.xpose.msra.mxu0 0.0
    %65 = vmatprep.subr.mxu0 0.0
    %66 = vmatpush1.xpose.msra.mxu0 0.0
    %67 = vmatprep.subr.mxu0 0.0
    %68 = vmatpush1.xpose.msra.mxu0 0.0
    %69 = vmatprep.subr.mxu0 0.0
    %70 = vmatpush1.xpose.msra.mxu0 0.0
    %71 = vmatprep.subr.mxu0 0.0
    %72 = vmatpush1.xpose.msra.mxu0 %v28
    %73 = vmatprep.subr.mxu0 0.0
    %74 = vmatpush2.xpose.msra.mxu0 0.0
    %75 = vmatprep.subr.mxu0 0.0
    %76 = vmatpush2.xpose.msra.mxu0 0.0
    %77 = vmatprep.subr.mxu0 0.0
    %78 = vmatpush2.xpose.msra.mxu0 0.0
    %79 = vmatprep.subr.mxu0 0.0
    %80 = vmatpush2.xpose.msra.mxu0 0.0
    %81 = vmatprep.subr.mxu0 0.0
    %82 = vmatpush2.xpose.msra.mxu0 0.0
    %83 = vmatprep.subr.mxu0 0.0
    %84 = vmatpush2.xpose.msra.mxu0 0.0
    %85 = vmatprep.subr.mxu0 0.0
    %86 = vmatpush2.xpose.msra.mxu0 0.0
    %87 = vmatprep.subr.mxu0 0.0
    %88 = vmatpush2.xpose.msra.mxu0 0.0
    %89 = vmatprep.subr.mxu0 0.0
    %90 = vmatpush2.xpose.msra.mxu0 0.0
    %91 = vmatprep.subr.mxu0 0.0
    %92 = vmatpush2.xpose.msra.mxu0 0.0
    %93 = vmatprep.subr.mxu0 0.0
    %94 = vmatpush2.xpose.msra.mxu0 0.0
    %95 = vmatprep.subr.mxu0 0.0
    %96 = vmatpush2.xpose.msra.mxu0 0.0
    %97 = vmatprep.subr.mxu0 0.0
    %98 = vmatpush2.xpose.msra.mxu0 0.0
    %99 = vmatprep.subr.mxu0 0.0
    %100 = vmatpush2.xpose.msra.mxu0 0.0
    %101 = vmatprep.subr.mxu0 0.0
    %102 = vmatpush2.xpose.msra.mxu0 0.0
    %103 = vmatprep.subr.mxu0 0.0
    %104 = vmatpush2.xpose.msra.mxu0 0.0
    %105 = vmatprep.mubr.f32.mxu0 0.0
    %106 = vmatmul.mubr.f32.gmra.mxu0 %v26
    %v107 = vpop.f32.mrf.mxu0
    %v108 = vadd.f32 %v34, %v107
    %v109 = vpop.f32.mrf.mxu0
    %110 = vmatprep.mubr.f32.mxu0 0.0
    %111 = vmatmul.mubr.f32.gmra.mxu0 %v27
    %v112 = vpop.f32.mrf.mxu0
    %v113 = vadd.f32 %v39, %v112
    %v114 = vpop.f32.mrf.mxu0
    %115 = vdwg.mxu0
    %v116 = vmul.f32 %v108, 1.442695
    %v117 = vpow.pop %v116
    %v118 = vmul.f32 %v113, 1.442695
    %v119 = vpow.pop %v118
    %v120 = vadd.f32 %v117, 1e-06
    %v121 = vadd.f32 %v119, 1e-06
    %vm122 = vcmask 64512
    %123 = vst.msk [vmem:[%s3] sm:$0xff] %vm122, %v120
    %vm124 = vcmask 58368
    %125 = vst.msk [vmem:[%s3 + $0x8] sm:$0x3] %vm124, %v121
    // Predicated region
    $region18: #{tpu_custom_call.1} parent=1 // pred_check
      _
    $region19: #{tpu_custom_call.1} parent=1 // pred_check_branch
      %127 = sbr.rel (0) target = $region21
    $region20: #{tpu_custom_call.1} parent=1 // pred_region
      _
    $region21: #{tpu_custom_call.1} parent=1 // pred_fallthru
      _
    // Predicated region
    $region22: #{tpu_custom_call.1} parent=1 // pred_check
      _
    $region23: #{tpu_custom_call.1} parent=1 // pred_check_branch
      %129 = sbr.rel (0) target = $region25
    $region24: #{tpu_custom_call.1} parent=1 // pred_region
      _
    $region25: #{tpu_custom_call.1} parent=1 // pred_fallthru
      _
    %130 = vsyncpa [#allocation3], 1

</llo_original>
